<compile_context>
chip_gen: v7x
topology: tpu7x:2x2x1
jax: 0.10.0
libtpu: 0.0.40
codegen_flags: <defaults>
</compile_context>

<pallas_src>
import functools

import jax
import jax.numpy as jnp
from jax import lax
from jax.experimental import pallas as pl
from jax.experimental.pallas import tpu as pltpu


def _rel_pos_emb_kernel(*refs, H, W, fused):
    """One grid step = G fused (batch*head) slabs, W query rows packed per out row.

    refs (fused=False): q_ref [G, N, D], relcat_ref [(2W-1)+(2H-1), D],
                        sel_ref [W*(W+H), W*N], o_ref [G, N//W, W*N]
    refs (fused=True):  ... plus c_ref [G, N//W, W*N] (content logits, aliased
                        with o_ref so content + relpos is written in place).
    """
    if fused:
        q_ref, relcat_ref, sel_ref, c_ref, o_ref = refs
    else:
        q_ref, relcat_ref, sel_ref, o_ref = refs
        c_ref = None

    G, N, D = q_ref.shape
    nw = 2 * W - 1

    # Narrow relative logits against the concatenated (width | height) tables:
    # one small MXU matmul, f32 accumulation via preferred_element_type.
    q2 = q_ref[...].reshape(G * N, D)
    logits = lax.dot_general(
        q2, relcat_ref[...], (((1,), (1,)), ((), ())),
        preferred_element_type=jnp.float32)            # [G*N, (2W-1)+(2H-1)]

    lw = logits[:, :nw].reshape(G, H, W, nw)            # width-relative logits
    lh = logits[:, nw:].reshape(G, H, W, 2 * H - 1)     # height-relative logits

    # rel->abs is a static slice once rows are grouped by their own y / x index.
    # Width: the pack index equals y, so each shifted slice lands directly in
    # its lane block (no scratch, no gather, no masked stores):
    #   aw[g, x, y*W + yk] = q[g,x,y] . rel_width[yk - y + W - 1]
    aw = jnp.concatenate(
        [lw[:, :, y, W - 1 - y:2 * W - 1 - y] for y in range(W)],
        axis=-1)                                        # [G, H, W*W]
    # Height: the shift depends on x (= packed output row), so slice per x,
    # stack along the (major) x axis and fold (y, xk) into lanes:
    #   ah[g, x, y*H + xk] = q[g,x,y] . rel_height[xk - x + H - 1]
    ah = jnp.stack(
        [lh[:, x, :, H - 1 - x:2 * H - 1 - x] for x in range(H)],
        axis=1)                                         # [G, H, W, H]
    ah = ah.reshape(G, H, W * H)

    a_mat = jnp.concatenate([aw, ah], axis=-1)          # [G, H, W*(W+H)]
    a_mat = a_mat.reshape(G * H, W * (W + H)).astype(sel_ref.dtype)

    # Expand the narrow logits of the W packed query rows to the full key grid
    # with one 0/1 matmul on the (otherwise idle) MXU.  The result is already
    # in the packed, lane-dense output layout: lane y*N + (xk*W + yk).
    out = lax.dot_general(
        a_mat, sel_ref[...], (((1,), (0,)), ((), ())),
        preferred_element_type=jnp.float32)             # [G*H, W*N]
    out = out.reshape(G, H, W * N)

    if c_ref is not None:                               # fused content + relpos
        out = out + c_ref[...].astype(jnp.float32)
    o_ref[...] = out.astype(o_ref.dtype)


def _pick_group_size(BNh, N, D, W, H, io_itemsize, fused):
    """Slabs fused per grid step: >= min(8, BNh) steps, VMEM-budgeted blocks."""
    f32 = 4

    def rnd(x, m):
        return -(-x // m) * m

    def vmem_est(g):
        q_blk = g * N * rnd(D, 128) * io_itemsize
        out_blk = g * (N // W) * rnd(W * N, 128) * io_itemsize
        c_blk = out_blk if fused else 0
        relcat = rnd(2 * (W + H) - 2, 8) * rnd(D, 128) * io_itemsize
        sel = rnd(W * (W + H), 8) * rnd(W * N, 128) * io_itemsize
        ints = (g * N * rnd(2 * (W + H) - 2, 128)           # logits / lw / lh
                + 2 * g * N * rnd(W + H, 128)                # aw + ah pieces
                + g * (N // W) * rnd(W * (W + H), 128)       # a_mat
                + g * (N // W) * rnd(W * N, 128)             # f32 out pre-cast
                ) * f32
        # double-buffered pipelined blocks + (conservatively x2) constants
        return 2 * (q_blk + out_blk + c_blk) + 2 * (relcat + sel) + ints

    min_steps = min(8, BNh)          # >= 4 steps per TensorCore on v7x
    budget = 12 * 1024 * 1024        # fits v5e's 16 MiB scoped-VMEM default
    slab_cap = 512 * 1024            # keep the f32 out slab modest

    cands = []
    for g in range(1, BNh + 1):
        if BNh % g:
            continue
        steps = BNh // g
        if steps < min_steps:
            continue
        if g > 1 and g * N * N * f32 > slab_cap:
            continue
        if vmem_est(g) > budget:
            continue
        cands.append((g, steps))
    if not cands:
        return 1
    even = [c for c in cands if c[1] % 2 == 0]   # keep both v7x cores busy
    pool = even if even else cands
    return max(g for g, _ in pool)


def _rel_pos_emb_call(q, rel_height, rel_width, fmap_size, content=None):
    """q: [B, Nh, N, D], N = fmap_size**2 (row-major x*W + y).

    Returns [B, Nh, N, N] relative-position logits (RelPosEmb.forward), or
    content + logits when `content` ([B, Nh, N, N]) is given (fused, aliased).
    """
    B, Nh, N, D = q.shape
    H = W = fmap_size
    assert N == H * W
    BNh = B * Nh
    cdtype = q.dtype                 # bf16 end-to-end when the caller runs bf16
    fused = content is not None

    qf = q.reshape(BNh, N, D)
    rel_cat = jnp.concatenate([rel_width, rel_height], axis=0).astype(cdtype)

    # Packed block-diagonal 0/1 expansion matrix (host/XLA-side constant).
    # Row y*W + yk selects keys with j % W == yk into lane block y*N;
    # row W*W + y*H + xk selects keys with j // W == xk into lane block y*N.
    j = jnp.arange(N)
    selw = (jnp.arange(W)[:, None] == (j % W)[None, :]).astype(cdtype)   # [W, N]
    selh = (jnp.arange(H)[:, None] == (j // W)[None, :]).astype(cdtype)  # [H, N]
    eye = jnp.eye(W, dtype=cdtype)
    sel = jnp.concatenate(
        [jnp.kron(eye, selw), jnp.kron(eye, selh)], axis=0)  # [W*(W+H), W*N]

    G = _pick_group_size(BNh, N, D, W, H, jnp.dtype(cdtype).itemsize, fused)
    steps = BNh // G

    in_specs = [
        pl.BlockSpec((G, N, D), lambda i: (i, 0, 0)),
        pl.BlockSpec((2 * W - 1 + 2 * H - 1, D), lambda i: (0, 0)),
        pl.BlockSpec((W * (W + H), W * N), lambda i: (0, 0)),
    ]
    inputs = [qf, rel_cat, sel]
    io_aliases = {}
    if fused:
        cf = content.astype(cdtype).reshape(BNh, N // W, W * N)
        in_specs.append(pl.BlockSpec((G, N // W, W * N), lambda i: (i, 0, 0)))
        inputs.append(cf)
        io_aliases = {3: 0}          # content block aliases the output block

    kernel = functools.partial(_rel_pos_emb_kernel, H=H, W=W, fused=fused)
    out = pl.pallas_call(
        kernel,
        out_shape=jax.ShapeDtypeStruct((BNh, N // W, W * N), cdtype),
        grid_spec=pltpu.PrefetchScalarGridSpec(
            num_scalar_prefetch=0,
            grid=(steps,),
            in_specs=in_specs,
            out_specs=pl.BlockSpec((G, N // W, W * N), lambda i: (i, 0, 0)),
        ),
        input_output_aliases=io_aliases,
        compiler_params=pltpu.CompilerParams(
            dimension_semantics=("parallel",),
            vmem_limit_bytes=24 * 1024 * 1024,
        ),
    )(*inputs)
    # Free reinterpretation of the contiguous packed buffer back to [B,Nh,N,N].
    return out.reshape(B, Nh, N, N)


def rel_pos_emb(q, rel_height, rel_width, fmap_size):
    """RelPosEmb.forward: [B, Nh, N, D] -> [B, Nh, N, N]."""
    return _rel_pos_emb_call(q, rel_height, rel_width, fmap_size)


def add_rel_pos_emb(content_logits, q, rel_height, rel_width, fmap_size):
    """content_logits + RelPosEmb.forward(q), fused (output aliases content)."""
    return _rel_pos_emb_call(q, rel_height, rel_width, fmap_size,
                             content=content_logits)


# ------------------------- pure-JAX reference (literal port) ----------------
def _rel_to_abs_ref(x):
    B, Nh, L, _ = x.shape
    x = jnp.concatenate([x, jnp.zeros((B, Nh, L, 1), x.dtype)], axis=3)
    flat_x = x.reshape(B, Nh, L * 2 * L)
    flat_x = jnp.concatenate([flat_x, jnp.zeros((B, Nh, L - 1), x.dtype)], axis=2)
    final_x = flat_x.reshape(B, Nh, L + 1, 2 * L - 1)
    return final_x[:, :, :L, L - 1:]


def _relative_logits_1d_ref(q, rel_k):
    B, Nh, H, W, _ = q.shape
    rel_logits = jnp.einsum('bnhwd,md->bnhwm', q, rel_k)
    rel_logits = rel_logits.reshape(-1, Nh * H, W, 2 * W - 1)
    rel_logits = _rel_to_abs_ref(rel_logits)
    rel_logits = rel_logits.reshape(-1, Nh, H, W, W)
    rel_logits = jnp.broadcast_to(rel_logits[:, :, :, None, :, :],
                                  (B, Nh, H, H, W, W))
    return rel_logits


def rel_pos_emb_ref(q, rel_height, rel_width, fmap_size):
    B, Nh, N, D = q.shape
    h = w = fmap_size
    q5 = q.reshape(B, Nh, h, w, D)
    rlw = _relative_logits_1d_ref(q5, rel_width)          # b n x i y j
    rlw = rlw.transpose(0, 1, 2, 4, 3, 5).reshape(B, Nh, h * w, h * w)
    q5t = q5.transpose(0, 1, 3, 2, 4)                      # b n y x d
    rlh = _relative_logits_1d_ref(q5t, rel_height)         # b n x i y j (x<->y)
    rlh = rlh.transpose(0, 1, 4, 2, 5, 3).reshape(B, Nh, h * w, h * w)
    return rlw + rlh


if __name__ == "__main__":
    B, Nh, fmap, D = 2, 4, 8, 32
    N = fmap * fmap
    scale = D ** (-0.5)

    key = jax.random.PRNGKey(0)
    k_h, k_w, k_q, k_k = jax.random.split(key, 4)
    rel_height = jax.random.normal(k_h, (fmap * 2 - 1, D), jnp.float32) * scale
    rel_width = jax.random.normal(k_w, (fmap * 2 - 1, D), jnp.float32) * scale
    q = jax.random.normal(k_q, (B, Nh, N, D), jnp.float32)
    k = jax.random.normal(k_k, (B, Nh, N, D), jnp.float32)

    # 1) Standalone RelPosEmb.forward (f32) vs. literal reference.
    out = jax.block_until_ready(rel_pos_emb(q, rel_height, rel_width, fmap))
    ref = rel_pos_emb_ref(q, rel_height, rel_width, fmap)
    assert out.shape == (B, Nh, N, N)
    assert jnp.allclose(out, ref, rtol=1e-4, atol=1e-4), "mismatch vs reference"

    # 2) Fused content + rel-pos logits (MHSA usage), output aliases content so
    #    the rel-pos tensor never makes its own HBM round trip.
    @jax.jit
    def fused_logits(qs, ks, rh, rw):
        content = jnp.einsum('bhid,bhjd->bhij', qs, ks)
        return add_rel_pos_emb(content, qs, rh, rw, fmap)

    out_f = jax.block_until_ready(fused_logits(q, k, rel_height, rel_width))
    ref_f = jnp.einsum('bhid,bhjd->bhij', q, k) + ref
    assert jnp.allclose(out_f, ref_f, rtol=1e-3, atol=1e-3), "fused mismatch"

    # 3) bf16 end-to-end smoke run (halves the HBM-bound output bytes).
    rh16 = rel_height.astype(jnp.bfloat16)
    rw16 = rel_width.astype(jnp.bfloat16)
    q16 = q.astype(jnp.bfloat16)
    out16 = jax.block_until_ready(rel_pos_emb(q16, rh16, rw16, fmap))
    ref16 = rel_pos_emb_ref(q16.astype(jnp.float32), rh16.astype(jnp.float32),
                            rw16.astype(jnp.float32), fmap)
    assert out16.dtype == jnp.bfloat16
    assert jnp.allclose(out16.astype(jnp.float32), ref16, rtol=0.05, atol=0.15)

    print("KERNEL_OK")
</pallas_src>

<mosaic_0001>
module attributes {stable_mosaic.version = 11 : i64} {
  func.func @_rel_pos_emb_kernel(%arg0: i32, %arg1: memref<1x64x32xf32, #tpu.memory_space<vmem>>, %arg2: memref<30x32xf32, #tpu.memory_space<vmem>>, %arg3: memref<128x512xf32, #tpu.memory_space<vmem>>, %arg4: memref<1x8x512xf32, #tpu.memory_space<vmem>>) attributes {dimension_semantics = [#tpu.dimension_semantics<parallel>], iteration_bounds = array<i64: 8>, scalar_prefetch = 0 : i64, scratch_operands = 0 : i64, tpu.core_type = #tpu.core_type<tc>, window_params = [{transform_indices = @transform_0, window_bounds = array<i64: 1, 64, 32>}, {pipeline_mode = #tpu.pipeline_mode<synchronous>, transform_indices = @transform_1, window_bounds = array<i64: 30, 32>}, {pipeline_mode = #tpu.pipeline_mode<synchronous>, transform_indices = @transform_2, window_bounds = array<i64: 128, 512>}, {transform_indices = @transform_3, window_bounds = array<i64: 1, 8, 512>}]} {
    %c0 = arith.constant 0 : index
    %c0_0 = arith.constant 0 : index
    %c0_1 = arith.constant 0 : index
    %0 = vector.load %arg1[%c0, %c0_0, %c0_1] : memref<1x64x32xf32, #tpu.memory_space<vmem>>, vector<1x64x32xf32>
    %1 = vector.shape_cast %0 : vector<1x64x32xf32> to vector<64x32xf32>
    %c0_2 = arith.constant 0 : index
    %c0_3 = arith.constant 0 : index
    %2 = vector.load %arg2[%c0_2, %c0_3] : memref<30x32xf32, #tpu.memory_space<vmem>>, vector<30x32xf32>
    %cst = arith.constant dense<0.000000e+00> : vector<64x30xf32>
    %3 = tpu.matmul %1, %2, %cst {dimension_numbers = #tpu.dot_dimension_numbers<[1], [1], [0], [0], [0, 0, 1, 0], [], []>} : vector<64x32xf32>, vector<30x32xf32>, vector<64x30xf32> -> vector<64x30xf32>
    %4 = vector.extract_strided_slice %3 {offsets = [0, 0], sizes = [64, 15], strides = [1, 1]} : vector<64x30xf32> to vector<64x15xf32>
    %5 = vector.shape_cast %4 : vector<64x15xf32> to vector<1x8x8x15xf32>
    %6 = vector.extract_strided_slice %3 {offsets = [0, 15], sizes = [64, 15], strides = [1, 1]} : vector<64x30xf32> to vector<64x15xf32>
    %7 = vector.shape_cast %6 : vector<64x15xf32> to vector<1x8x8x15xf32>
    %8 = vector.extract_strided_slice %5 {offsets = [0, 0, 0, 7], sizes = [1, 8, 1, 8], strides = [1, 1, 1, 1]} : vector<1x8x8x15xf32> to vector<1x8x1x8xf32>
    %9 = vector.shape_cast %8 : vector<1x8x1x8xf32> to vector<1x8x8xf32>
    %10 = vector.extract_strided_slice %5 {offsets = [0, 0, 1, 6], sizes = [1, 8, 1, 8], strides = [1, 1, 1, 1]} : vector<1x8x8x15xf32> to vector<1x8x1x8xf32>
    %11 = vector.shape_cast %10 : vector<1x8x1x8xf32> to vector<1x8x8xf32>
    %12 = vector.extract_strided_slice %5 {offsets = [0, 0, 2, 5], sizes = [1, 8, 1, 8], strides = [1, 1, 1, 1]} : vector<1x8x8x15xf32> to vector<1x8x1x8xf32>
    %13 = vector.shape_cast %12 : vector<1x8x1x8xf32> to vector<1x8x8xf32>
    %14 = vector.extract_strided_slice %5 {offsets = [0, 0, 3, 4], sizes = [1, 8, 1, 8], strides = [1, 1, 1, 1]} : vector<1x8x8x15xf32> to vector<1x8x1x8xf32>
    %15 = vector.shape_cast %14 : vector<1x8x1x8xf32> to vector<1x8x8xf32>
    %16 = vector.extract_strided_slice %5 {offsets = [0, 0, 4, 3], sizes = [1, 8, 1, 8], strides = [1, 1, 1, 1]} : vector<1x8x8x15xf32> to vector<1x8x1x8xf32>
    %17 = vector.shape_cast %16 : vector<1x8x1x8xf32> to vector<1x8x8xf32>
    %18 = vector.extract_strided_slice %5 {offsets = [0, 0, 5, 2], sizes = [1, 8, 1, 8], strides = [1, 1, 1, 1]} : vector<1x8x8x15xf32> to vector<1x8x1x8xf32>
    %19 = vector.shape_cast %18 : vector<1x8x1x8xf32> to vector<1x8x8xf32>
    %20 = vector.extract_strided_slice %5 {offsets = [0, 0, 6, 1], sizes = [1, 8, 1, 8], strides = [1, 1, 1, 1]} : vector<1x8x8x15xf32> to vector<1x8x1x8xf32>
    %21 = vector.shape_cast %20 : vector<1x8x1x8xf32> to vector<1x8x8xf32>
    %22 = vector.extract_strided_slice %5 {offsets = [0, 0, 7, 0], sizes = [1, 8, 1, 8], strides = [1, 1, 1, 1]} : vector<1x8x8x15xf32> to vector<1x8x1x8xf32>
    %23 = vector.shape_cast %22 : vector<1x8x1x8xf32> to vector<1x8x8xf32>
    %24 = tpu.concatenate %9, %11, %13, %15, %17, %19, %21, %23 in 2 : vector<1x8x8xf32>, vector<1x8x8xf32>, vector<1x8x8xf32>, vector<1x8x8xf32>, vector<1x8x8xf32>, vector<1x8x8xf32>, vector<1x8x8xf32>, vector<1x8x8xf32> -> vector<1x8x64xf32>
    %25 = vector.extract_strided_slice %7 {offsets = [0, 0, 0, 7], sizes = [1, 1, 8, 8], strides = [1, 1, 1, 1]} : vector<1x8x8x15xf32> to vector<1x1x8x8xf32>
    %26 = vector.shape_cast %25 : vector<1x1x8x8xf32> to vector<1x8x8xf32>
    %27 = vector.extract_strided_slice %7 {offsets = [0, 1, 0, 6], sizes = [1, 1, 8, 8], strides = [1, 1, 1, 1]} : vector<1x8x8x15xf32> to vector<1x1x8x8xf32>
    %28 = vector.shape_cast %27 : vector<1x1x8x8xf32> to vector<1x8x8xf32>
    %29 = vector.extract_strided_slice %7 {offsets = [0, 2, 0, 5], sizes = [1, 1, 8, 8], strides = [1, 1, 1, 1]} : vector<1x8x8x15xf32> to vector<1x1x8x8xf32>
    %30 = vector.shape_cast %29 : vector<1x1x8x8xf32> to vector<1x8x8xf32>
    %31 = vector.extract_strided_slice %7 {offsets = [0, 3, 0, 4], sizes = [1, 1, 8, 8], strides = [1, 1, 1, 1]} : vector<1x8x8x15xf32> to vector<1x1x8x8xf32>
    %32 = vector.shape_cast %31 : vector<1x1x8x8xf32> to vector<1x8x8xf32>
    %33 = vector.extract_strided_slice %7 {offsets = [0, 4, 0, 3], sizes = [1, 1, 8, 8], strides = [1, 1, 1, 1]} : vector<1x8x8x15xf32> to vector<1x1x8x8xf32>
    %34 = vector.shape_cast %33 : vector<1x1x8x8xf32> to vector<1x8x8xf32>
    %35 = vector.extract_strided_slice %7 {offsets = [0, 5, 0, 2], sizes = [1, 1, 8, 8], strides = [1, 1, 1, 1]} : vector<1x8x8x15xf32> to vector<1x1x8x8xf32>
    %36 = vector.shape_cast %35 : vector<1x1x8x8xf32> to vector<1x8x8xf32>
    %37 = vector.extract_strided_slice %7 {offsets = [0, 6, 0, 1], sizes = [1, 1, 8, 8], strides = [1, 1, 1, 1]} : vector<1x8x8x15xf32> to vector<1x1x8x8xf32>
    %38 = vector.shape_cast %37 : vector<1x1x8x8xf32> to vector<1x8x8xf32>
    %39 = vector.extract_strided_slice %7 {offsets = [0, 7, 0, 0], sizes = [1, 1, 8, 8], strides = [1, 1, 1, 1]} : vector<1x8x8x15xf32> to vector<1x1x8x8xf32>
    %40 = vector.shape_cast %39 : vector<1x1x8x8xf32> to vector<1x8x8xf32>
    %41 = vector.shape_cast %26 : vector<1x8x8xf32> to vector<1x1x8x8xf32>
    %42 = vector.shape_cast %28 : vector<1x8x8xf32> to vector<1x1x8x8xf32>
    %43 = vector.shape_cast %30 : vector<1x8x8xf32> to vector<1x1x8x8xf32>
    %44 = vector.shape_cast %32 : vector<1x8x8xf32> to vector<1x1x8x8xf32>
    %45 = vector.shape_cast %34 : vector<1x8x8xf32> to vector<1x1x8x8xf32>
    %46 = vector.shape_cast %36 : vector<1x8x8xf32> to vector<1x1x8x8xf32>
    %47 = vector.shape_cast %38 : vector<1x8x8xf32> to vector<1x1x8x8xf32>
    %48 = vector.shape_cast %40 : vector<1x8x8xf32> to vector<1x1x8x8xf32>
    %49 = tpu.concatenate %41, %42, %43, %44, %45, %46, %47, %48 in 1 : vector<1x1x8x8xf32>, vector<1x1x8x8xf32>, vector<1x1x8x8xf32>, vector<1x1x8x8xf32>, vector<1x1x8x8xf32>, vector<1x1x8x8xf32>, vector<1x1x8x8xf32>, vector<1x1x8x8xf32> -> vector<1x8x8x8xf32>
    %50 = vector.shape_cast %49 : vector<1x8x8x8xf32> to vector<1x8x64xf32>
    %51 = tpu.concatenate %24, %50 in 2 : vector<1x8x64xf32>, vector<1x8x64xf32> -> vector<1x8x128xf32>
    %52 = vector.shape_cast %51 : vector<1x8x128xf32> to vector<8x128xf32>
    %c0_4 = arith.constant 0 : index
    %c0_5 = arith.constant 0 : index
    %53 = vector.load %arg3[%c0_4, %c0_5] : memref<128x512xf32, #tpu.memory_space<vmem>>, vector<128x512xf32>
    %cst_6 = arith.constant dense<0.000000e+00> : vector<8x512xf32>
    %54 = tpu.matmul %52, %53, %cst_6 {dimension_numbers = #tpu.dot_dimension_numbers<[1], [0], [0], [1], [0, 0, 1, 1], [], []>} : vector<8x128xf32>, vector<128x512xf32>, vector<8x512xf32> -> vector<8x512xf32>
    %55 = vector.shape_cast %54 : vector<8x512xf32> to vector<1x8x512xf32>
    %c0_7 = arith.constant 0 : index
    %c0_8 = arith.constant 0 : index
    %c0_9 = arith.constant 0 : index
    %56 = vector.load %arg4[%c0_7, %c0_8, %c0_9] : memref<1x8x512xf32, #tpu.memory_space<vmem>>, vector<1x8x512xf32>
    tpu.vector_store %arg4[%c0_7, %c0_8, %c0_9], %55 {strides = array<i32>} : memref<1x8x512xf32, #tpu.memory_space<vmem>>, vector<1x8x512xf32>,
    return
  }
  func.func @transform_0(%arg0: i32) -> (i32, i32, i32) {
    %c0_i32 = arith.constant 0 : i32
    %c0_i32_0 = arith.constant 0 : i32
    %c0_i32_1 = arith.constant 0 : i32
    return %arg0, %c0_i32, %c0_i32_0 : i32, i32, i32
  }
  func.func @transform_1(%arg0: i32) -> (i32, i32) {
    %c0_i32 = arith.constant 0 : i32
    %c0_i32_0 = arith.constant 0 : i32
    %c0_i32_1 = arith.constant 0 : i32
    return %c0_i32, %c0_i32_0 : i32, i32
  }
  func.func @transform_2(%arg0: i32) -> (i32, i32) {
    %c0_i32 = arith.constant 0 : i32
    %c0_i32_0 = arith.constant 0 : i32
    %c0_i32_1 = arith.constant 0 : i32
    return %c0_i32, %c0_i32_0 : i32, i32
  }
  func.func @transform_3(%arg0: i32) -> (i32, i32, i32) {
    %c0_i32 = arith.constant 0 : i32
    %c0_i32_0 = arith.constant 0 : i32
    %c0_i32_1 = arith.constant 0 : i32
    return %arg0, %c0_i32, %c0_i32_0 : i32, i32, i32
  }
}

</mosaic_0001>

<llo_original>
// kernel: tpu_custom_call.1
$region0: #{tpu_custom_call.1}
  #allocation0 [shape = 'u32[]', space=smem, size = 0x4, offset = 0x4, fixed_abs, tag = 'smem constant byte address 0x4 - core index']
  #allocation1 [shape = 'u32[144,128]{1,0:T(1,128)}', space=vmem, size = 0x12000, scoped, tag = 'internal scratch']
  %s0 = inlined_call_operand.vmem [shape: f32[8,64,32], index: 0, kind: input, shape index: {}]
  %s1 = inlined_call_operand.vmem [shape: f32[30,32], index: 1, kind: input, shape index: {}]
  %s2 = inlined_call_operand.vmem [shape: f32[128,512], index: 2, kind: input, shape index: {}]
  %s3 = inlined_call_operand.hbm [shape: f32[8,8,512], index: 3, kind: output, shape index: {}]
  %s4 = sld [smem:[#allocation0]]
  $region45: #{tpu_custom_call.1} parent=0
    _
  %s6 = ssub.s32 1, %s4
  %s7 = scalar_select 0, %s6, %s4
  $region1: #{tpu_custom_call.1} parent=0
    #allocation2 [shape = 'u8[32768]{0}', space=vmem, size = 0x8000, scoped, tag = 'output window, operand 0']
    #allocation3 [shape = 's32[2]{0}', space=sflag, size = 0x8, scoped, tag = 'scoped memory for tpu_custom_call.1']
    %8 = vsyncpa [#allocation3], 0
    %s9 = scalar_lea.sflag [#allocation3], 1
    %10 = vsyncpa %s9, 0
    loop: start=0, step=1, limit=10
    $region2: #{tpu_custom_call.1} parent=1 // loop_pre_header
      _
    $region3: #{tpu_custom_call.1} parent=1 // loop_header
      %s12 = sphi 0, %s16
      %p13 = scmp.ge.s32.totalorder %s12, 10
      %s22 = sphi 0, %s24
      %s25 = sphi 0, %s22
      %s26 = sphi 0, %s25
      %s42 = sphi 0, %s26
      %s46 = sphi 0, %s46
      %s48 = sphi 0, %s46
      %s49 = sphi 0, %s48
      %s63 = sphi 0, %s49
      %s67 = sphi 0, %s67
      %s69 = sphi 0, %s67
      %s70 = sphi 0, %s69
      %s84 = sphi 0, %s70
      %s90 = sphi 0, %s92
      %s93 = sphi 0, %s90
      %s94 = sphi 0, %s93
      %s110 = sphi 0, %s94
    $region4: #{tpu_custom_call.1} parent=1 // loop_header_branch
      %15 = sbr.rel (%p13) target = $region8
    $region5: #{tpu_custom_call.1} parent=1 // loop_body
      %s17 = ssub.s32 %s12, 1
      %s18 = ssub.s32 %s12, 2
      %s19 = sadd.s32 %s12, 1
      %s20 = ssub.s32 %s12, %s19
      %p21 = scmp.eq.s32.totalorder %s20, 0
      %s23 = sadd.s32 %s22, 1
      %s24 = scalar_select %p21, %s22, %s23
      %p27 = pneg %p21
      %p28 = scmp.eq.s32.totalorder %s12, 7
      %p29 = por %p27, %p28
      %p30 = scmp.ne.s32.totalorder %s22, %s25
      %p31 = scmp.eq.s32.totalorder %s12, 0
      %p32 = por %p30, %p31
      %p33 = scmp.ne.s32.totalorder %s22, %s25
      %p34 = scmp.eq.s32.totalorder %s17, 7
      %p35 = por %p33, %p34
      %p36 = scmp.ne.s32.totalorder %s25, %s26
      %p37 = scmp.eq.s32.totalorder %s17, 0
      %p38 = por %p36, %p37
      %p39 = scmp.ne.s32.totalorder %s25, %s26
      %p40 = scmp.eq.s32.totalorder %s18, 7
      %p41 = por %p39, %p40
      %p43 = scmp.ne.s32.totalorder %s26, %s42
      %p44 = scmp.eq.s32.totalorder %s18, 0
      %p45 = por %p43, %p44
      %s47 = sadd.s32 %s46, 1
      %p50 = scmp.eq.s32.totalorder %s12, 7
      %p51 = scmp.ne.s32.totalorder %s46, %s48
      %p52 = scmp.eq.s32.totalorder %s12, 0
      %p53 = por %p51, %p52
      %p54 = scmp.ne.s32.totalorder %s46, %s48
      %p55 = scmp.eq.s32.totalorder %s17, 7
      %p56 = por %p54, %p55
      %p57 = scmp.ne.s32.totalorder %s48, %s49
      %p58 = scmp.eq.s32.totalorder %s17, 0
      %p59 = por %p57, %p58
      %p60 = scmp.ne.s32.totalorder %s48, %s49
      %p61 = scmp.eq.s32.totalorder %s18, 7
      %p62 = por %p60, %p61
      %p64 = scmp.ne.s32.totalorder %s49, %s63
      %p65 = scmp.eq.s32.totalorder %s18, 0
      %p66 = por %p64, %p65
      %s68 = sadd.s32 %s67, 1
      %p71 = scmp.eq.s32.totalorder %s12, 7
      %p72 = scmp.ne.s32.totalorder %s67, %s69
      %p73 = scmp.eq.s32.totalorder %s12, 0
      %p74 = por %p72, %p73
      %p75 = scmp.ne.s32.totalorder %s67, %s69
      %p76 = scmp.eq.s32.totalorder %s17, 7
      %p77 = por %p75, %p76
      %p78 = scmp.ne.s32.totalorder %s69, %s70
      %p79 = scmp.eq.s32.totalorder %s17, 0
      %p80 = por %p78, %p79
      %p81 = scmp.ne.s32.totalorder %s69, %s70
      %p82 = scmp.eq.s32.totalorder %s18, 7
      %p83 = por %p81, %p82
      %p85 = scmp.ne.s32.totalorder %s70, %s84
      %p86 = scmp.eq.s32.totalorder %s18, 0
      %p87 = por %p85, %p86
      %s88 = ssub.s32 %s12, %s19
      %p89 = scmp.eq.s32.totalorder %s88, 0
      %s91 = sadd.s32 %s90, 1
      %s92 = scalar_select %p89, %s90, %s91
      %p95 = pneg %p89
      %p96 = scmp.eq.s32.totalorder %s12, 7
      %p97 = por %p95, %p96
      %p98 = scmp.ne.s32.totalorder %s90, %s93
      %p99 = scmp.eq.s32.totalorder %s12, 0
      %p100 = por %p98, %p99
      %p101 = scmp.ne.s32.totalorder %s90, %s93
      %p102 = scmp.eq.s32.totalorder %s17, 7
      %p103 = por %p101, %p102
      %p104 = scmp.ne.s32.totalorder %s93, %s94
      %p105 = scmp.eq.s32.totalorder %s17, 0
      %p106 = por %p104, %p105
      %p107 = scmp.ne.s32.totalorder %s93, %s94
      %p108 = scmp.eq.s32.totalorder %s18, 7
      %p109 = por %p107, %p108
      %p111 = scmp.ne.s32.totalorder %s94, %s110
      %p112 = scmp.eq.s32.totalorder %s18, 0
      %p113 = por %p111, %p112
      %p114 = scmp.le.s32.totalorder 1, %s12
      %p115 = scmp.lt.s32.totalorder %s12, 9
      %p116 = pnand %p114, %p115
      %p117 = pneg %p116
      // Predicated region
      $region9: #{tpu_custom_call.1} parent=5 // pred_check
        _
      $region10: #{tpu_custom_call.1} parent=5 // pred_check_branch
        %119 = sbr.rel (%p116) target = $region12
      $region11: #{tpu_custom_call.1} parent=5 // pred_region
        %s120 = ssub.s32 %s12, 1
        // Predicated region
        $region13: #{tpu_custom_call.1} parent=11 // pred_check
          %p121 = pneg %p59
        $region14: #{tpu_custom_call.1} parent=11 // pred_check_branch
          %123 = sbr.rel (%p121) target = $region16
        $region15: #{tpu_custom_call.1} parent=11 // pred_region
          _
        $region16: #{tpu_custom_call.1} parent=11 // pred_fallthru
          _
        // Predicated region
        $region17: #{tpu_custom_call.1} parent=11 // pred_check
          %p124 = pneg %p80
        $region18: #{tpu_custom_call.1} parent=11 // pred_check_branch
          %126 = sbr.rel (%p124) target = $region20
        $region19: #{tpu_custom_call.1} parent=11 // pred_region
          _
        $region20: #{tpu_custom_call.1} parent=11 // pred_fallthru
          _
      $region12: #{tpu_custom_call.1} parent=5 // pred_fallthru
        _
      %p127 = scmp.lt.s32.totalorder %s12, 8
      // Predicated region
      $region21: #{tpu_custom_call.1} parent=5 // pred_check
        %p128 = pneg %p127
      $region22: #{tpu_custom_call.1} parent=5 // pred_check_branch
        %130 = sbr.rel (%p128) target = $region24
      $region23: #{tpu_custom_call.1} parent=5 // pred_region
        // Predicated region
        $region25: #{tpu_custom_call.1} parent=23 // pred_check
          %p131 = pneg %p32
        $region26: #{tpu_custom_call.1} parent=23 // pred_check_branch
          %133 = sbr.rel (%p131) target = $region28
        $region27: #{tpu_custom_call.1} parent=23 // pred_region
          %p134 = scmp.lt.s32.totalorder %s12, 7
          %s135 = scalar_select %p134, %s12, 7
          %s136 = smul.addr %s135, 8
          %s137 = smul.addr %s136, 8
          %s138 = scalar_lea.vmem %s0, %s137
        $region28: #{tpu_custom_call.1} parent=23 // pred_fallthru
          _
      $region24: #{tpu_custom_call.1} parent=5 // pred_fallthru
        _
      %p139 = scmp.le.s32.totalorder 1, %s12
      %p140 = scmp.lt.s32.totalorder %s12, 9
      %p141 = pnand %p139, %p140
      %p142 = pneg %p141
      // Predicated region
      $region29: #{tpu_custom_call.1} parent=5 // pred_check
        _
      $region30: #{tpu_custom_call.1} parent=5 // pred_check_branch
        %144 = sbr.rel (%p141) target = $region32
      $region31: #{tpu_custom_call.1} parent=5 // pred_region
        %s145 = ssub.s32 %s12, 1
        %p146 = scmp.lt.s32.totalorder %s17, 7
        %s147 = scalar_select %p146, %s17, 7
        %s148 = smul.addr %s147, 8
        %s149 = smul.addr %s148, 8
        %s150 = scalar_lea.vmem %s0, %s149
        %p151 = pneg %p38
        %p152 = pneg %p35
        %p153 = pneg %p59
        %p154 = pneg %p56
        %p155 = pneg %p80
        %p156 = pneg %p77
        %p157 = pneg %p106
        %p158 = pneg %p103
        %s159 = sand.u32 %s93, 1
        %s160 = scalar_lea.sflag [#allocation3], %s159
        %s161 = sand.u32 %s93, 1
        %s162 = smul.addr %s161, 32
        %s163 = scalar_lea.vmem [#allocation2], %s162
        %p164 = scmp.lt.s32.totalorder %s17, 7
        %s165 = scalar_select %p164, %s17, 7
        %s166 = smul.addr %s165, 8
        %s167 = smul.addr %s166, 8
        %s168 = scalar_lea.vmem %s0, %s167
        %v169 = vld [vmem:[%s168] sm:$0xff]
        %v170 = vld [vmem:[%s168 + $0x8] sm:$0xff]
        %v171 = vld [vmem:[%s168 + $0x10] sm:$0xff]
        %v172 = vld [vmem:[%s168 + $0x18] sm:$0xff]
        %v173 = vld [vmem:[%s168 + $0x20] sm:$0xff]
        %v174 = vld [vmem:[%s168 + $0x28] sm:$0xff]
        %v175 = vld [vmem:[%s168 + $0x30] sm:$0xff]
        %v176 = vld [vmem:[%s168 + $0x38] sm:$0xff]
        %v177 = vld [vmem:[%s1] sm:$0xff]
        %v178 = vld [vmem:[%s1 + $0x8] sm:$0xff]
        %v179 = vld [vmem:[%s1 + $0x10] sm:$0xff]
        %v180 = vld [vmem:[%s1 + $0x18] sm:$0x3f]
        %vm181 = vcmask 261120
        %v183 = vsel %vm181, %v169, 0
        %v186 = vsel %vm181, %v170, 0
        %v189 = vsel %vm181, %v171, 0
        %v192 = vsel %vm181, %v172, 0
        %v195 = vsel %vm181, %v173, 0
        %v198 = vsel %vm181, %v174, 0
        %v201 = vsel %vm181, %v175, 0
        %v204 = vsel %vm181, %v176, 0
        %v207 = vsel %vm181, %v177, 0
        %v210 = vsel %vm181, %v178, 0
        %v213 = vsel %vm181, %v179, 0
        %v216 = vsel %vm181, %v180, 0
        %218 = vmatprep.subr.mxu0 0.0
        %219 = vmatpush1.xpose.msra.mxu0 %v207
        %220 = vmatprep.subr.mxu0 0.0
        %221 = vmatpush1.xpose.msra.mxu0 %v210
        %222 = vmatprep.subr.mxu0 0.0
        %223 = vmatpush1.xpose.msra.mxu0 %v213
        %224 = vmatprep.subr.mxu0 0.0
        %225 = vmatpush1.xpose.msra.mxu0 %v216
        %226 = vmatprep.subr.mxu0 0.0
        %227 = vmatpush1.xpose.msra.mxu0 0.0
        %228 = vmatprep.subr.mxu0 0.0
        %229 = vmatpush1.xpose.msra.mxu0 0.0
        %230 = vmatprep.subr.mxu0 0.0
        %231 = vmatpush1.xpose.msra.mxu0 0.0
        %232 = vmatprep.subr.mxu0 0.0
        %233 = vmatpush1.xpose.msra.mxu0 0.0
        %234 = vmatprep.subr.mxu0 0.0
        %235 = vmatpush1.xpose.msra.mxu0 0.0
        %236 = vmatprep.subr.mxu0 0.0
        %237 = vmatpush1.xpose.msra.mxu0 0.0
        %238 = vmatprep.subr.mxu0 0.0
        %239 = vmatpush1.xpose.msra.mxu0 0.0
        %240 = vmatprep.subr.mxu0 0.0
        %241 = vmatpush1.xpose.msra.mxu0 0.0
        %242 = vmatprep.subr.mxu0 0.0
        %243 = vmatpush1.xpose.msra.mxu0 0.0
        %244 = vmatprep.subr.mxu0 0.0
        %245 = vmatpush1.xpose.msra.mxu0 0.0
        %246 = vmatprep.subr.mxu0 0.0
        %247 = vmatpush1.xpose.msra.mxu0 0.0
        %248 = vmatprep.subr.mxu0 0.0
        %249 = vmatpush1.xpose.msra.mxu0 0.0
        %250 = vmatprep.subr.mxu0 0.0
        %251 = vmatpush1.xpose.msra.mxu0 0.0
        %252 = vmatprep.subr.mxu0 0.0
        %253 = vmatpush1.xpose.msra.mxu0 0.0
        %254 = vmatprep.subr.mxu0 0.0
        %255 = vmatpush1.xpose.msra.mxu0 0.0
        %256 = vmatprep.subr.mxu0 0.0
        %257 = vmatpush1.xpose.msra.mxu0 0.0
        %258 = vmatprep.subr.mxu0 0.0
        %259 = vmatpush1.xpose.msra.mxu0 0.0
        %260 = vmatprep.subr.mxu0 0.0
        %261 = vmatpush1.xpose.msra.mxu0 0.0
        %262 = vmatprep.subr.mxu0 0.0
        %263 = vmatpush1.xpose.msra.mxu0 0.0
        %264 = vmatprep.subr.mxu0 0.0
        %265 = vmatpush1.xpose.msra.mxu0 0.0
        %266 = vmatprep.subr.mxu0 0.0
        %267 = vmatpush1.xpose.msra.mxu0 0.0
        %268 = vmatprep.subr.mxu0 0.0
        %269 = vmatpush1.xpose.msra.mxu0 0.0
        %270 = vmatprep.subr.mxu0 0.0
        %271 = vmatpush1.xpose.msra.mxu0 0.0
        %272 = vmatprep.subr.mxu0 0.0
        %273 = vmatpush1.xpose.msra.mxu0 0.0
        %274 = vmatprep.subr.mxu0 0.0
        %275 = vmatpush1.xpose.msra.mxu0 0.0
        %276 = vmatprep.subr.mxu0 0.0
        %277 = vmatpush1.xpose.msra.mxu0 0.0
        %278 = vmatprep.subr.mxu0 0.0
        %279 = vmatpush1.xpose.msra.mxu0 0.0
        %280 = vmatprep.subr.mxu0 0.0
        %281 = vmatpush1.xpose.msra.mxu0 0.0
        %282 = vmatprep.mubr.f32.mxu0 0.0
        %283 = vmatmul.mubr.f32.gmra.mrb[0].mxu0 %v183
        %v284 = vpop.f32.mrb[0].mxu0
        %v285 = vadd.f32 0.0, %v284
        %v286 = vpop.f32.mrb[0].mxu0
        %287 = vmatprep.mubr.f32.mxu0 0.0
        %288 = vmatmul.mubr.f32.gmra.mrb[0].mxu0 %v186
        %v289 = vpop.f32.mrb[0].mxu0
        %v290 = vadd.f32 0.0, %v289
        %v291 = vpop.f32.mrb[0].mxu0
        %292 = vmatprep.mubr.f32.mxu0 0.0
        %293 = vmatmul.mubr.f32.gmra.mrb[0].mxu0 %v189
        %v294 = vpop.f32.mrb[0].mxu0
        %v295 = vadd.f32 0.0, %v294
        %v296 = vpop.f32.mrb[0].mxu0
        %297 = vmatprep.mubr.f32.mxu0 0.0
        %298 = vmatmul.mubr.f32.gmra.mrb[0].mxu0 %v192
        %v299 = vpop.f32.mrb[0].mxu0
        %v300 = vadd.f32 0.0, %v299
        %v301 = vpop.f32.mrb[0].mxu0
        %302 = vmatprep.mubr.f32.mxu0 0.0
        %303 = vmatmul.mubr.f32.gmra.mrb[0].mxu0 %v195
        %v304 = vpop.f32.mrb[0].mxu0
        %v305 = vadd.f32 0.0, %v304
        %v306 = vpop.f32.mrb[0].mxu0
        %307 = vmatprep.mubr.f32.mxu0 0.0
        %308 = vmatmul.mubr.f32.gmra.mrb[0].mxu0 %v198
        %v309 = vpop.f32.mrb[0].mxu0
        %v310 = vadd.f32 0.0, %v309
        %v311 = vpop.f32.mrb[0].mxu0
        %312 = vmatprep.mubr.f32.mxu0 0.0
        %313 = vmatmul.mubr.f32.gmra.mrb[0].mxu0 %v201
        %v314 = vpop.f32.mrb[0].mxu0
        %v315 = vadd.f32 0.0, %v314
        %v316 = vpop.f32.mrb[0].mxu0
        %317 = vmatprep.mubr.f32.mxu0 0.0
        %318 = vmatmul.mubr.f32.gmra.mrb[0].mxu0 %v204
        %v319 = vpop.f32.mrb[0].mxu0
        %v320 = vadd.f32 0.0, %v319
        %v321 = vpop.f32.mrb[0].mxu0
        %322 = vdwg.mxu0
        %v331 = vrot.slane %v290, 7
        %vm332 = vcmask 1041409
        %v333 = vsel %vm332, %v331, %v285
        %v334 = vrot.slane %v295, 6
        %vm335 = vcmask 1042434
        %v336 = vsel %vm335, %v334, %v333
        %v337 = vrot.slane %v300, 5
        %vm338 = vcmask 1043459
        %v339 = vsel %vm338, %v337, %v336
        %v340 = vrot.slane %v305, 4
        %vm341 = vcmask 1044484
        %v342 = vsel %vm341, %v340, %v339
        %v343 = vrot.slane %v310, 3
        %vm344 = vcmask 1045509
        %v345 = vsel %vm344, %v343, %v342
        %v346 = vrot.slane %v315, 2
        %vm347 = vcmask 1046534
        %v348 = vsel %vm347, %v346, %v345
        %v349 = vrot.slane %v320, 1
        %vm350 = vcmask 1047559
        %v351 = vsel %vm350, %v349, %v348
        %352 = vrot.lane.b32.xlu0 %v351, 121
        %v353 = vpop.permute.xlu0 %352
        %v355 = vrot.slane %v285, 1
        %v356 = vsel %vm332, %v290, %v355
        %v357 = vrot.slane %v295, 7
        %v358 = vsel %vm335, %v357, %v356
        %v359 = vrot.slane %v300, 6
        %v360 = vsel %vm338, %v359, %v358
        %v361 = vrot.slane %v305, 5
        %v362 = vsel %vm341, %v361, %v360
        %v363 = vrot.slane %v310, 4
        %v364 = vsel %vm344, %v363, %v362
        %v365 = vrot.slane %v315, 3
        %v366 = vsel %vm347, %v365, %v364
        %v367 = vrot.slane %v320, 2
        %v368 = vsel %vm350, %v367, %v366
        %369 = vrot.lane.b32.xlu0 %v368, 2
        %v370 = vpop.permute.xlu0 %369
        %v372 = vrot.slane %v285, 2
        %v373 = vrot.slane %v290, 1
        %v374 = vsel %vm332, %v373, %v372
        %v375 = vsel %vm335, %v295, %v374
        %v376 = vrot.slane %v300, 7
        %v377 = vsel %vm338, %v376, %v375
        %v378 = vrot.slane %v305, 6
        %v379 = vsel %vm341, %v378, %v377
        %v380 = vrot.slane %v310, 5
        %v381 = vsel %vm344, %v380, %v379
        %v382 = vrot.slane %v315, 4
        %v383 = vsel %vm347, %v382, %v381
        %v384 = vrot.slane %v320, 3
        %v385 = vsel %vm350, %v384, %v383
        %386 = vrot.lane.b32.xlu0 %v385, 11
        %v387 = vpop.permute.xlu0 %386
        %v389 = vrot.slane %v285, 3
        %v390 = vrot.slane %v290, 2
        %v391 = vsel %vm332, %v390, %v389
        %v392 = vrot.slane %v295, 1
        %v393 = vsel %vm335, %v392, %v391
        %v394 = vsel %vm338, %v300, %v393
        %v395 = vrot.slane %v305, 7
        %v396 = vsel %vm341, %v395, %v394
        %v397 = vrot.slane %v310, 6
        %v398 = vsel %vm344, %v397, %v396
        %v399 = vrot.slane %v315, 5
        %v400 = vsel %vm347, %v399, %v398
        %v401 = vrot.slane %v320, 4
        %v402 = vsel %vm350, %v401, %v400
        %403 = vrot.lane.b32.xlu0 %v402, 20
        %v404 = vpop.permute.xlu0 %403
        %v406 = vrot.slane %v285, 4
        %v407 = vrot.slane %v290, 3
        %v408 = vsel %vm332, %v407, %v406
        %v409 = vrot.slane %v295, 2
        %v410 = vsel %vm335, %v409, %v408
        %v411 = vrot.slane %v300, 1
        %v412 = vsel %vm338, %v411, %v410
        %v413 = vsel %vm341, %v305, %v412
        %v414 = vrot.slane %v310, 7
        %v415 = vsel %vm344, %v414, %v413
        %v416 = vrot.slane %v315, 6
        %v417 = vsel %vm347, %v416, %v415
        %v418 = vrot.slane %v320, 5
        %v419 = vsel %vm350, %v418, %v417
        %420 = vrot.lane.b32.xlu0 %v419, 29
        %v421 = vpop.permute.xlu0 %420
        %v423 = vrot.slane %v285, 5
        %v424 = vrot.slane %v290, 4
        %v425 = vsel %vm332, %v424, %v423
        %v426 = vrot.slane %v295, 3
        %v427 = vsel %vm335, %v426, %v425
        %v428 = vrot.slane %v300, 2
        %v429 = vsel %vm338, %v428, %v427
        %v430 = vrot.slane %v305, 1
        %v431 = vsel %vm341, %v430, %v429
        %v432 = vsel %vm344, %v310, %v431
        %v433 = vrot.slane %v315, 7
        %v434 = vsel %vm347, %v433, %v432
        %v435 = vrot.slane %v320, 6
        %v436 = vsel %vm350, %v435, %v434
        %437 = vrot.lane.b32.xlu0 %v436, 38
        %v438 = vpop.permute.xlu0 %437
        %v440 = vrot.slane %v285, 6
        %v441 = vrot.slane %v290, 5
        %v442 = vsel %vm332, %v441, %v440
        %v443 = vrot.slane %v295, 4
        %v444 = vsel %vm335, %v443, %v442
        %v445 = vrot.slane %v300, 3
        %v446 = vsel %vm338, %v445, %v444
        %v447 = vrot.slane %v305, 2
        %v448 = vsel %vm341, %v447, %v446
        %v449 = vrot.slane %v310, 1
        %v450 = vsel %vm344, %v449, %v448
        %v451 = vsel %vm347, %v315, %v450
        %v452 = vrot.slane %v320, 7
        %v453 = vsel %vm350, %v452, %v451
        %454 = vrot.lane.b32.xlu0 %v453, 47
        %v455 = vpop.permute.xlu0 %454
        %v457 = vrot.slane %v285, 7
        %v458 = vrot.slane %v290, 6
        %v459 = vsel %vm332, %v458, %v457
        %v460 = vrot.slane %v295, 5
        %v461 = vsel %vm335, %v460, %v459
        %v462 = vrot.slane %v300, 4
        %v463 = vsel %vm338, %v462, %v461
        %v464 = vrot.slane %v305, 3
        %v465 = vsel %vm341, %v464, %v463
        %v466 = vrot.slane %v310, 2
        %v467 = vsel %vm344, %v466, %v465
        %v468 = vrot.slane %v315, 1
        %v469 = vsel %vm347, %v468, %v467
        %v470 = vsel %vm350, %v320, %v469
        %471 = vrot.lane.b32.xlu0 %v470, 56
        %v472 = vpop.permute.xlu0 %471
        %vm474 = vcmask 64512
        %v475 = vsel %vm474, %v353, %v370
        %vm476 = vcmask 130048
        %v477 = vsel %vm476, %v475, %v387
        %vm478 = vcmask 195584
        %v479 = vsel %vm478, %v477, %v404
        %v480 = vsel %vm181, %v479, %v421
        %vm481 = vcmask 326656
        %v482 = vsel %vm481, %v480, %v438
        %vm483 = vcmask 392192
        %v484 = vsel %vm483, %v482, %v455
        %vm485 = vcmask 457728
        %v486 = vsel %vm485, %v484, %v472
        %487 = vrot.lane.b32.xlu0 %v290, 1
        %v488 = vpop.permute.xlu0 %487
        %489 = vrot.lane.b32.xlu0 %v295, 2
        %v490 = vpop.permute.xlu0 %489
        %491 = vrot.lane.b32.xlu0 %v300, 3
        %v492 = vpop.permute.xlu0 %491
        %493 = vrot.lane.b32.xlu0 %v305, 4
        %v494 = vpop.permute.xlu0 %493
        %495 = vrot.lane.b32.xlu0 %v310, 5
        %v496 = vpop.permute.xlu0 %495
        %497 = vrot.lane.b32.xlu0 %v315, 6
        %v498 = vpop.permute.xlu0 %497
        %499 = vrot.lane.b32.xlu0 %v320, 7
        %v500 = vpop.permute.xlu0 %499
        %501 = vrot.lane.b32.xlu0 %v285, 106
        %v502 = vpop.permute.xlu0 %501
        %503 = vrot.lane.b32.xlu0 %v488, 106
        %v504 = vpop.permute.xlu0 %503
        %505 = vrot.lane.b32.xlu0 %v490, 106
        %v506 = vpop.permute.xlu0 %505
        %507 = vrot.lane.b32.xlu0 %v492, 106
        %v508 = vpop.permute.xlu0 %507
        %509 = vrot.lane.b32.xlu0 %v494, 106
        %v510 = vpop.permute.xlu0 %509
        %511 = vrot.lane.b32.xlu0 %v496, 106
        %v512 = vpop.permute.xlu0 %511
        %513 = vrot.lane.b32.xlu0 %v498, 106
        %v514 = vpop.permute.xlu0 %513
        %515 = vrot.lane.b32.xlu0 %v500, 106
        %v516 = vpop.permute.xlu0 %515
        %v525 = vcombine.low %v502, %v506
        %v526 = vcombine.high %v502, %v506
        %v528 = vunpack.c.l.s4 1983009808
        %v529 = vunpack.c.0.s8 %v528
        %v530 = vlaneseq
        %v531 = vshrl.u32 %v530, 7
        %v532 = vsub.s32 %v529, %v531
        %v533 = vrot.slane %v525, %v532
        %v535 = vunpack.c.l.s4 1983009808
        %v536 = vunpack.c.0.s8 %v535
        %v537 = vlaneseq
        %v538 = vshrl.u32 %v537, 7
        %v539 = vsub.s32 %v536, %v538
        %v540 = vrot.slane %v526, %v539
        %v541 = vcombine.low %v504, %v508
        %v542 = vcombine.high %v504, %v508
        %v544 = vunpack.c.l.s4 1983009808
        %v545 = vunpack.c.0.s8 %v544
        %v546 = vlaneseq
        %v547 = vshrl.u32 %v546, 7
        %v548 = vsub.s32 %v545, %v547
        %v549 = vrot.slane %v541, %v548
        %v551 = vunpack.c.l.s4 1983009808
        %v552 = vunpack.c.0.s8 %v551
        %v553 = vlaneseq
        %v554 = vshrl.u32 %v553, 7
        %v555 = vsub.s32 %v552, %v554
        %v556 = vrot.slane %v542, %v555
        %v557 = vcombine.low %v510, %v514
        %v558 = vcombine.high %v510, %v514
        %v560 = vunpack.c.l.s4 1983009808
        %v561 = vunpack.c.0.s8 %v560
        %v562 = vlaneseq
        %v563 = vshrl.u32 %v562, 7
        %v564 = vsub.s32 %v561, %v563
        %v565 = vrot.slane %v557, %v564
        %v567 = vunpack.c.l.s4 1983009808
        %v568 = vunpack.c.0.s8 %v567
        %v569 = vlaneseq
        %v570 = vshrl.u32 %v569, 7
        %v571 = vsub.s32 %v568, %v570
        %v572 = vrot.slane %v558, %v571
        %v573 = vcombine.low %v512, %v516
        %v574 = vcombine.high %v512, %v516
        %v576 = vunpack.c.l.s4 1983009808
        %v577 = vunpack.c.0.s8 %v576
        %v578 = vlaneseq
        %v579 = vshrl.u32 %v578, 7
        %v580 = vsub.s32 %v577, %v579
        %v581 = vrot.slane %v573, %v580
        %v583 = vunpack.c.l.s4 1983009808
        %v584 = vunpack.c.0.s8 %v583
        %v585 = vlaneseq
        %v586 = vshrl.u32 %v585, 7
        %v587 = vsub.s32 %v584, %v586
        %v588 = vrot.slane %v574, %v587
        %v589 = vcombine.low %v533, %v549
        %v590 = vcombine.high %v533, %v549
        %v592 = vunpack.c.l.s4 1934713408
        %v593 = vunpack.c.0.s8 %v592
        %v594 = vlaneseq
        %v595 = vshrl.u32 %v594, 7
        %v596 = vsub.s32 %v593, %v595
        %v597 = vrot.slane %v589, %v596
        %v599 = vunpack.c.l.s4 1934713408
        %v600 = vunpack.c.0.s8 %v599
        %v601 = vlaneseq
        %v602 = vshrl.u32 %v601, 7
        %v603 = vsub.s32 %v600, %v602
        %v604 = vrot.slane %v590, %v603
        %v605 = vcombine.low %v540, %v556
        %v606 = vcombine.high %v540, %v556
        %v608 = vunpack.c.l.s4 1934713408
        %v609 = vunpack.c.0.s8 %v608
        %v610 = vlaneseq
        %v611 = vshrl.u32 %v610, 7
        %v612 = vsub.s32 %v609, %v611
        %v613 = vrot.slane %v605, %v612
        %v615 = vunpack.c.l.s4 1934713408
        %v616 = vunpack.c.0.s8 %v615
        %v617 = vlaneseq
        %v618 = vshrl.u32 %v617, 7
        %v619 = vsub.s32 %v616, %v618
        %v620 = vrot.slane %v606, %v619
        %v621 = vcombine.low %v565, %v581
        %v622 = vcombine.high %v565, %v581
        %v624 = vunpack.c.l.s4 1934713408
        %v625 = vunpack.c.0.s8 %v624
        %v626 = vlaneseq
        %v627 = vshrl.u32 %v626, 7
        %v628 = vsub.s32 %v625, %v627
        %v629 = vrot.slane %v621, %v628
        %v631 = vunpack.c.l.s4 1934713408
        %v632 = vunpack.c.0.s8 %v631
        %v633 = vlaneseq
        %v634 = vshrl.u32 %v633, 7
        %v635 = vsub.s32 %v632, %v634
        %v636 = vrot.slane %v622, %v635
        %v637 = vcombine.low %v572, %v588
        %v638 = vcombine.high %v572, %v588
        %v640 = vunpack.c.l.s4 1934713408
        %v641 = vunpack.c.0.s8 %v640
        %v642 = vlaneseq
        %v643 = vshrl.u32 %v642, 7
        %v644 = vsub.s32 %v641, %v643
        %v645 = vrot.slane %v637, %v644
        %v647 = vunpack.c.l.s4 1934713408
        %v648 = vunpack.c.0.s8 %v647
        %v649 = vlaneseq
        %v650 = vshrl.u32 %v649, 7
        %v651 = vsub.s32 %v648, %v650
        %v652 = vrot.slane %v638, %v651
        %v653 = vcombine.low %v597, %v629
        %v654 = vcombine.high %v597, %v629
        %v655 = vcombine.low %v604, %v636
        %v656 = vcombine.high %v604, %v636
        %v657 = vcombine.low %v613, %v645
        %v658 = vcombine.high %v613, %v645
        %v659 = vcombine.low %v620, %v652
        %v660 = vcombine.high %v620, %v652
        %662 = vrot.lane.b32.xlu0 %v654, 8
        %v663 = vpop.permute.xlu0 %662
        %666 = vrot.lane.b32.xlu0 %v655, 16
        %v667 = vpop.permute.xlu0 %666
        %670 = vrot.lane.b32.xlu0 %v656, 24
        %v671 = vpop.permute.xlu0 %670
        %674 = vrot.lane.b32.xlu0 %v657, 32
        %v675 = vpop.permute.xlu0 %674
        %678 = vrot.lane.b32.xlu0 %v658, 40
        %v679 = vpop.permute.xlu0 %678
        %682 = vrot.lane.b32.xlu0 %v659, 48
        %v683 = vpop.permute.xlu0 %682
        %686 = vrot.lane.b32.xlu0 %v660, 56
        %v687 = vpop.permute.xlu0 %686
        %v689 = vsel %vm474, %v653, %v663
        %v690 = vsel %vm476, %v689, %v667
        %v691 = vsel %vm478, %v690, %v671
        %v692 = vsel %vm181, %v691, %v675
        %v693 = vsel %vm481, %v692, %v679
        %v694 = vsel %vm483, %v693, %v683
        %v695 = vsel %vm485, %v694, %v687
        %697 = vrot.lane.b32.xlu0 %v695, 64
        %v698 = vpop.permute.xlu0 %697
        %vm700 = vcmask 523264
        %v701 = vsel %vm700, %v486, %v698
        %v702 = vld [vmem:[%s2] sm:$0xff]
        %v703 = vld [vmem:[%s2 + $0x8] sm:$0xff]
        %v704 = vld [vmem:[%s2 + $0x10] sm:$0xff]
        %v705 = vld [vmem:[%s2 + $0x18] sm:$0xff]
        %v706 = vld [vmem:[%s2 + $0x20] sm:$0xff]
        %v707 = vld [vmem:[%s2 + $0x28] sm:$0xff]
        %v708 = vld [vmem:[%s2 + $0x30] sm:$0xff]
        %v709 = vld [vmem:[%s2 + $0x38] sm:$0xff]
        %v710 = vld [vmem:[%s2 + $0x40] sm:$0xff]
        %v711 = vld [vmem:[%s2 + $0x48] sm:$0xff]
        %v712 = vld [vmem:[%s2 + $0x50] sm:$0xff]
        %v713 = vld [vmem:[%s2 + $0x58] sm:$0xff]
        %v714 = vld [vmem:[%s2 + $0x60] sm:$0xff]
        %v715 = vld [vmem:[%s2 + $0x68] sm:$0xff]
        %v716 = vld [vmem:[%s2 + $0x70] sm:$0xff]
        %v717 = vld [vmem:[%s2 + $0x78] sm:$0xff]
        %v718 = vld [vmem:[%s2 + $0x80] sm:$0xff]
        %v719 = vld [vmem:[%s2 + $0x88] sm:$0xff]
        %v720 = vld [vmem:[%s2 + $0x90] sm:$0xff]
        %v721 = vld [vmem:[%s2 + $0x98] sm:$0xff]
        %v722 = vld [vmem:[%s2 + $0xa0] sm:$0xff]
        %v723 = vld [vmem:[%s2 + $0xa8] sm:$0xff]
        %v724 = vld [vmem:[%s2 + $0xb0] sm:$0xff]
        %v725 = vld [vmem:[%s2 + $0xb8] sm:$0xff]
        %v726 = vld [vmem:[%s2 + $0xc0] sm:$0xff]
        %v727 = vld [vmem:[%s2 + $0xc8] sm:$0xff]
        %v728 = vld [vmem:[%s2 + $0xd0] sm:$0xff]
        %v729 = vld [vmem:[%s2 + $0xd8] sm:$0xff]
        %v730 = vld [vmem:[%s2 + $0xe0] sm:$0xff]
        %v731 = vld [vmem:[%s2 + $0xe8] sm:$0xff]
        %v732 = vld [vmem:[%s2 + $0xf0] sm:$0xff]
        %v733 = vld [vmem:[%s2 + $0xf8] sm:$0xff]
        %v734 = vld [vmem:[%s2 + $0x100] sm:$0xff]
        %v735 = vld [vmem:[%s2 + $0x108] sm:$0xff]
        %v736 = vld [vmem:[%s2 + $0x110] sm:$0xff]
        %v737 = vld [vmem:[%s2 + $0x118] sm:$0xff]
        %v738 = vld [vmem:[%s2 + $0x120] sm:$0xff]
        %v739 = vld [vmem:[%s2 + $0x128] sm:$0xff]
        %v740 = vld [vmem:[%s2 + $0x130] sm:$0xff]
        %v741 = vld [vmem:[%s2 + $0x138] sm:$0xff]
        %v742 = vld [vmem:[%s2 + $0x140] sm:$0xff]
        %v743 = vld [vmem:[%s2 + $0x148] sm:$0xff]
        %v744 = vld [vmem:[%s2 + $0x150] sm:$0xff]
        %v745 = vld [vmem:[%s2 + $0x158] sm:$0xff]
        %v746 = vld [vmem:[%s2 + $0x160] sm:$0xff]
        %v747 = vld [vmem:[%s2 + $0x168] sm:$0xff]
        %v748 = vld [vmem:[%s2 + $0x170] sm:$0xff]
        %v749 = vld [vmem:[%s2 + $0x178] sm:$0xff]
        %v750 = vld [vmem:[%s2 + $0x180] sm:$0xff]
        %v751 = vld [vmem:[%s2 + $0x188] sm:$0xff]
        %v752 = vld [vmem:[%s2 + $0x190] sm:$0xff]
        %v753 = vld [vmem:[%s2 + $0x198] sm:$0xff]
        %v754 = vld [vmem:[%s2 + $0x1a0] sm:$0xff]
        %v755 = vld [vmem:[%s2 + $0x1a8] sm:$0xff]
        %v756 = vld [vmem:[%s2 + $0x1b0] sm:$0xff]
        %v757 = vld [vmem:[%s2 + $0x1b8] sm:$0xff]
        %v758 = vld [vmem:[%s2 + $0x1c0] sm:$0xff]
        %v759 = vld [vmem:[%s2 + $0x1c8] sm:$0xff]
        %v760 = vld [vmem:[%s2 + $0x1d0] sm:$0xff]
        %v761 = vld [vmem:[%s2 + $0x1d8] sm:$0xff]
        %v762 = vld [vmem:[%s2 + $0x1e0] sm:$0xff]
        %v763 = vld [vmem:[%s2 + $0x1e8] sm:$0xff]
        %v764 = vld [vmem:[%s2 + $0x1f0] sm:$0xff]
        %v765 = vld [vmem:[%s2 + $0x1f8] sm:$0xff]
        %766 = vmatprep.subr.mxu0 %v703
        %767 = vmatpush1.msra.mxu0 %v702
        %768 = vmatprep.subr.mxu0 %v707
        %769 = vmatpush1.msra.mxu0 %v706
        %770 = vmatprep.subr.mxu0 %v711
        %771 = vmatpush1.msra.mxu0 %v710
        %772 = vmatprep.subr.mxu0 %v715
        %773 = vmatpush1.msra.mxu0 %v714
        %774 = vmatprep.subr.mxu0 %v719
        %775 = vmatpush1.msra.mxu0 %v718
        %776 = vmatprep.subr.mxu0 %v723
        %777 = vmatpush1.msra.mxu0 %v722
        %778 = vmatprep.subr.mxu0 %v727
        %779 = vmatpush1.msra.mxu0 %v726
        %780 = vmatprep.subr.mxu0 %v731
        %781 = vmatpush1.msra.mxu0 %v730
        %782 = vmatprep.subr.mxu0 %v735
        %783 = vmatpush1.msra.mxu0 %v734
        %784 = vmatprep.subr.mxu0 %v739
        %785 = vmatpush1.msra.mxu0 %v738
        %786 = vmatprep.subr.mxu0 %v743
        %787 = vmatpush1.msra.mxu0 %v742
        %788 = vmatprep.subr.mxu0 %v747
        %789 = vmatpush1.msra.mxu0 %v746
        %790 = vmatprep.subr.mxu0 %v751
        %791 = vmatpush1.msra.mxu0 %v750
        %792 = vmatprep.subr.mxu0 %v755
        %793 = vmatpush1.msra.mxu0 %v754
        %794 = vmatprep.subr.mxu0 %v759
        %795 = vmatpush1.msra.mxu0 %v758
        %796 = vmatprep.subr.mxu0 %v763
        %797 = vmatpush1.msra.mxu0 %v762
        %798 = vmatprep.subr.mxu0 0.0
        %799 = vmatpush1.msra.mxu0 0.0
        %800 = vmatprep.subr.mxu0 0.0
        %801 = vmatpush1.msra.mxu0 0.0
        %802 = vmatprep.subr.mxu0 0.0
        %803 = vmatpush1.msra.mxu0 0.0
        %804 = vmatprep.subr.mxu0 0.0
        %805 = vmatpush1.msra.mxu0 0.0
        %806 = vmatprep.subr.mxu0 0.0
        %807 = vmatpush1.msra.mxu0 0.0
        %808 = vmatprep.subr.mxu0 0.0
        %809 = vmatpush1.msra.mxu0 0.0
        %810 = vmatprep.subr.mxu0 0.0
        %811 = vmatpush1.msra.mxu0 0.0
        %812 = vmatprep.subr.mxu0 0.0
        %813 = vmatpush1.msra.mxu0 0.0
        %814 = vmatprep.subr.mxu0 0.0
        %815 = vmatpush1.msra.mxu0 0.0
        %816 = vmatprep.subr.mxu0 0.0
        %817 = vmatpush1.msra.mxu0 0.0
        %818 = vmatprep.subr.mxu0 0.0
        %819 = vmatpush1.msra.mxu0 0.0
        %820 = vmatprep.subr.mxu0 0.0
        %821 = vmatpush1.msra.mxu0 0.0
        %822 = vmatprep.subr.mxu0 0.0
        %823 = vmatpush1.msra.mxu0 0.0
        %824 = vmatprep.subr.mxu0 0.0
        %825 = vmatpush1.msra.mxu0 0.0
        %826 = vmatprep.subr.mxu0 0.0
        %827 = vmatpush1.msra.mxu0 0.0
        %828 = vmatprep.subr.mxu0 0.0
        %829 = vmatpush1.msra.mxu0 0.0
        %830 = vmatprep.mubr.f32.mxu0 0.0
        %831 = vmatmul.mubr.f32.gmra.mrb[0].mxu0 %v701
        %v832 = vpop.f32.mrb[0].mxu0
        %v833 = vadd.f32 0.0, %v832
        %v834 = vpop.f32.mrb[0].mxu0
        %v835 = vadd.f32 0.0, %v834
        %836 = vdwg.mxu0
        %837 = vmatprep.subr.mxu0 %v705
        %838 = vmatpush1.msra.mxu0 %v704
        %839 = vmatprep.subr.mxu0 %v709
        %840 = vmatpush1.msra.mxu0 %v708
        %841 = vmatprep.subr.mxu0 %v713
        %842 = vmatpush1.msra.mxu0 %v712
        %843 = vmatprep.subr.mxu0 %v717
        %844 = vmatpush1.msra.mxu0 %v716
        %845 = vmatprep.subr.mxu0 %v721
        %846 = vmatpush1.msra.mxu0 %v720
        %847 = vmatprep.subr.mxu0 %v725
        %848 = vmatpush1.msra.mxu0 %v724
        %849 = vmatprep.subr.mxu0 %v729
        %850 = vmatpush1.msra.mxu0 %v728
        %851 = vmatprep.subr.mxu0 %v733
        %852 = vmatpush1.msra.mxu0 %v732
        %853 = vmatprep.subr.mxu0 %v737
        %854 = vmatpush1.msra.mxu0 %v736
        %855 = vmatprep.subr.mxu0 %v741
        %856 = vmatpush1.msra.mxu0 %v740
        %857 = vmatprep.subr.mxu0 %v745
        %858 = vmatpush1.msra.mxu0 %v744
        %859 = vmatprep.subr.mxu0 %v749
        %860 = vmatpush1.msra.mxu0 %v748
        %861 = vmatprep.subr.mxu0 %v753
        %862 = vmatpush1.msra.mxu0 %v752
        %863 = vmatprep.subr.mxu0 %v757
        %864 = vmatpush1.msra.mxu0 %v756
        %865 = vmatprep.subr.mxu0 %v761
        %866 = vmatpush1.msra.mxu0 %v760
        %867 = vmatprep.subr.mxu0 %v765
        %868 = vmatpush1.msra.mxu0 %v764
        %869 = vmatprep.subr.mxu0 0.0
        %870 = vmatpush1.msra.mxu0 0.0
        %871 = vmatprep.subr.mxu0 0.0
        %872 = vmatpush1.msra.mxu0 0.0
        %873 = vmatprep.subr.mxu0 0.0
        %874 = vmatpush1.msra.mxu0 0.0
        %875 = vmatprep.subr.mxu0 0.0
        %876 = vmatpush1.msra.mxu0 0.0
        %877 = vmatprep.subr.mxu0 0.0
        %878 = vmatpush1.msra.mxu0 0.0
        %879 = vmatprep.subr.mxu0 0.0
        %880 = vmatpush1.msra.mxu0 0.0
        %881 = vmatprep.subr.mxu0 0.0
        %882 = vmatpush1.msra.mxu0 0.0
        %883 = vmatprep.subr.mxu0 0.0
        %884 = vmatpush1.msra.mxu0 0.0
        %885 = vmatprep.subr.mxu0 0.0
        %886 = vmatpush1.msra.mxu0 0.0
        %887 = vmatprep.subr.mxu0 0.0
        %888 = vmatpush1.msra.mxu0 0.0
        %889 = vmatprep.subr.mxu0 0.0
        %890 = vmatpush1.msra.mxu0 0.0
        %891 = vmatprep.subr.mxu0 0.0
        %892 = vmatpush1.msra.mxu0 0.0
        %893 = vmatprep.subr.mxu0 0.0
        %894 = vmatpush1.msra.mxu0 0.0
        %895 = vmatprep.subr.mxu0 0.0
        %896 = vmatpush1.msra.mxu0 0.0
        %897 = vmatprep.subr.mxu0 0.0
        %898 = vmatpush1.msra.mxu0 0.0
        %899 = vmatprep.subr.mxu0 0.0
        %900 = vmatpush1.msra.mxu0 0.0
        %901 = vmatprep.mubr.f32.mxu0 0.0
        %902 = vmatmul.mubr.f32.gmra.mrb[0].mxu0 %v701
        %v903 = vpop.f32.mrb[0].mxu0
        %v904 = vadd.f32 0.0, %v903
        %v905 = vpop.f32.mrb[0].mxu0
        %v906 = vadd.f32 0.0, %v905
        %907 = vdwg.mxu0
        %908 = vst [vmem:[%s163] sm:$0xff] %v833
        %909 = vst [vmem:[%s163 + $0x8] sm:$0xff] %v835
        %910 = vst [vmem:[%s163 + $0x10] sm:$0xff] %v904
        %911 = vst [vmem:[%s163 + $0x18] sm:$0xff] %v906
        %s912 = sand.u32 %s93, 1
        %s913 = scalar_lea.sflag [#allocation3], %s912
        %s914 = sand.u32 %s93, 1
        %s915 = smul.addr %s914, 32
        %s916 = scalar_lea.vmem [#allocation2], %s915
        // Predicated region
        $region33: #{tpu_custom_call.1} parent=31 // pred_check
          %p917 = pneg %p103
        $region34: #{tpu_custom_call.1} parent=31 // pred_check_branch
          %919 = sbr.rel (%p917) target = $region36
        $region35: #{tpu_custom_call.1} parent=31 // pred_region
          %s921 = ssub.s32 512, 512
          %922 = vsyncadd %s913, %s921
          %s923 = smul.addr %s17, 4
          %s924 = smul.addr %s923, 128
          %s925 = scalar_lea.hbm %s3, %s924
          %s927 = sshll.u32 %s916, 4
          %s928 = int_to_ptr.vmem [resolvable:$true] %s927
          %930 = dma.vmem_to_hbm [thread:$0]  %s928, 512, %s925, %s913
        $region36: #{tpu_custom_call.1} parent=31 // pred_fallthru
          _
      $region32: #{tpu_custom_call.1} parent=5 // pred_fallthru
        _
      %p931 = scmp.le.s32.totalorder 2, %s12
      // Predicated region
      $region37: #{tpu_custom_call.1} parent=5 // pred_check
        %p932 = pneg %p931
      $region38: #{tpu_custom_call.1} parent=5 // pred_check_branch
        %934 = sbr.rel (%p932) target = $region40
      $region39: #{tpu_custom_call.1} parent=5 // pred_region
        %s935 = ssub.s32 %s12, 2
        // Predicated region
        $region41: #{tpu_custom_call.1} parent=39 // pred_check
          %p936 = pneg %p109
        $region42: #{tpu_custom_call.1} parent=39 // pred_check_branch
          %938 = sbr.rel (%p936) target = $region44
        $region43: #{tpu_custom_call.1} parent=39 // pred_region
          %s939 = sand.u32 %s94, 1
          %s940 = scalar_lea.sflag [#allocation3], %s939
          %s941 = sand.u32 %s94, 1
          %s942 = smul.addr %s941, 32
          %s943 = scalar_lea.vmem [#allocation2], %s942
          %944 = dma.done %s940, 512
        $region44: #{tpu_custom_call.1} parent=39 // pred_fallthru
          _
      $region40: #{tpu_custom_call.1} parent=5 // pred_fallthru
        _
    $region6: #{tpu_custom_call.1} parent=1 // loop_footer
      %s16 = sadd.s32 1, %s12
    $region7: #{tpu_custom_call.1} parent=1 // loop_footer_branch
      %11 = sbr.rel target = $region3
    $region8: #{tpu_custom_call.1} parent=1 // loop_exit
      _
    %945 = vsyncpa [#allocation3], 1
    %s946 = scalar_lea.sflag [#allocation3], 1
    %947 = vsyncpa %s946, 1

</llo_original>
